<compile_context>
chip_gen: v5e
topology: v5e:2x2
jax: 0.10.0
libtpu: 0.0.40
codegen_flags: <defaults>
</compile_context>

<pallas_src>
import jax
import jax.numpy as jnp
from jax.experimental import pallas as pl
from jax.experimental.pallas import tpu as pltpu


def _round_up(n, m):
    return (n + m - 1) // m * m


def netquant_kernel(x_ref, w1_ref, b1_ref, w2_ref, b2_ref, out_ref):
    # x_ref:  (TM, 784) f32       w1_ref: (784, 128) bf16   b1_ref: (1, 128) f32
    # w2_ref: (128, 128) bf16     b2_ref: (1, 128) f32 (-1e30 in pad lanes)
    # out_ref: (TM, 128) bf16 (only the first 10 columns are meaningful)

    # QuantStub -> identity.  Cast to bf16 in-kernel (MXU-native); the HBM
    # stream stays f32 so no extra wrapper-side convert pass is needed.
    x = x_ref[...].astype(jnp.bfloat16)

    # fc1 + bias + ReLU (MXU bf16 matmul, f32 accumulation)
    h = jnp.dot(x, w1_ref[...], preferred_element_type=jnp.float32)
    h = jnp.maximum(h + b1_ref[...], 0.0)

    # dropout(0.5) -> identity in eval mode

    # fc2 (padded to 128 lane-dense output columns)
    logits = jnp.dot(h.astype(jnp.bfloat16), w2_ref[...],
                     preferred_element_type=jnp.float32)
    logits = logits + b2_ref[...]  # pad lanes get -1e30 -> exp() contributes 0

    # log_softmax over the (padded) feature axis; pad lanes are masked by the
    # -1e30 bias so max/sum are numerically identical to the 10-wide softmax.
    m = jnp.max(logits, axis=-1, keepdims=True)
    shifted = logits - m
    lse = jnp.log(jnp.sum(jnp.exp(shifted), axis=-1, keepdims=True))

    # DeQuantStub -> identity.  bf16 store halves writeback bytes; the pad
    # columns hold huge negative values but are sliced off by the wrapper.
    out_ref[...] = (shifted - lse).astype(out_ref.dtype)


def netquant_forward(x, w1_k, b1_k, w2_k, b2_k, *, tm_max=4096):
    """x: [B, 784] float32 -> log-probs [B, 10] float32.

    w1_k/b1_k/w2_k/b2_k are the kernel-layout params from prepare_params().
    """
    B, K = x.shape
    assert K == 784

    # Target ~8 grid steps for mid/large batches (feeds both v7x TCs and
    # gives the auto-pipeline room to overlap DMA with compute); multiple of
    # 16 so the bf16 output block matches its native (16, 128) tile.
    TM = min(tm_max, _round_up(pl.cdiv(B, 8), 16))
    grid = (pl.cdiv(B, TM),)

    cost = pl.CostEstimate(
        flops=2 * B * (784 * 128 + 128 * 128),
        transcendentals=B * 128,
        bytes_accessed=(x.size * 4                       # streamed f32 activations
                        + w1_k.size * 2 + w2_k.size * 2  # resident bf16 weights
                        + b1_k.size * 4 + b2_k.size * 4
                        + B * 128 * 2),                  # bf16 output slab
    )

    out = pl.pallas_call(
        netquant_kernel,
        out_shape=jax.ShapeDtypeStruct((B, 128), jnp.bfloat16),
        grid_spec=pl.GridSpec(
            grid=grid,
            in_specs=[
                pl.BlockSpec((TM, 784), lambda i: (i, 0)),    # streamed x tile
                pl.BlockSpec((784, 128), lambda i: (0, 0)),   # resident weights
                pl.BlockSpec((1, 128), lambda i: (0, 0)),
                pl.BlockSpec((128, 128), lambda i: (0, 0)),
                pl.BlockSpec((1, 128), lambda i: (0, 0)),
            ],
            out_specs=pl.BlockSpec((TM, 128), lambda i: (i, 0)),
        ),
        compiler_params=pltpu.CompilerParams(
            dimension_semantics=("parallel",),     # batch tiles are independent
            vmem_limit_bytes=48 * 1024 * 1024,     # <= v7x 64 MiB physical
        ),
        cost_estimate=cost,
    )(x, w1_k, b1_k, w2_k, b2_k)

    return out[:, :10].astype(jnp.float32)


def init_params(key):
    """Deterministic PyTorch-style nn.Linear params (weight [out,in], bias [out])."""
    k1, k2, k3, k4 = jax.random.split(key, 4)
    bound1 = 1.0 / (784 ** 0.5)
    w1 = jax.random.uniform(k1, (128, 784), jnp.float32, -bound1, bound1)
    b1 = jax.random.uniform(k2, (128,), jnp.float32, -bound1, bound1)
    bound2 = 1.0 / (128 ** 0.5)
    w2 = jax.random.uniform(k3, (10, 128), jnp.float32, -bound2, bound2)
    b2 = jax.random.uniform(k4, (10,), jnp.float32, -bound2, bound2)
    return w1, b1, w2, b2


def prepare_params(w1, b1, w2, b2):
    """One-time layout/dtype prep for the kernel.

    - transpose to [in, out] so the kernel computes x @ W on the MXU
    - cast weights to bf16 (MXU-native, halves resident/streamed bytes)
    - pad fc2 output dim 10 -> 128 (lane-dense matmul / softmax / store);
      pad bias slots are -1e30 so log_softmax ignores them.
    """
    w1_k = jnp.asarray(w1.T, jnp.bfloat16)                       # (784, 128)
    b1_k = jnp.asarray(b1, jnp.float32).reshape(1, 128)          # (1, 128)
    w2_k = jnp.zeros((128, 128), jnp.bfloat16).at[:, :10].set(
        jnp.asarray(w2.T, jnp.bfloat16))                         # (128, 128)
    b2_k = jnp.full((1, 128), -1e30, jnp.float32).at[0, :10].set(
        jnp.asarray(b2, jnp.float32))                            # (1, 128)
    return w1_k, b1_k, w2_k, b2_k


if __name__ == "__main__":
    key = jax.random.PRNGKey(0)
    kx, kp = jax.random.split(key)

    B = 64
    x = jax.random.normal(kx, (B, 784), jnp.float32)
    w1, b1, w2, b2 = init_params(kp)
    w1_k, b1_k, w2_k, b2_k = prepare_params(w1, b1, w2, b2)

    out = netquant_forward(x, w1_k, b1_k, w2_k, b2_k)
    out = jax.block_until_ready(out)

    # reference in plain JAX (full f32); tolerance absorbs the bf16 MXU
    # inputs and the bf16 output store.
    h_ref = jnp.maximum(x @ w1.T + b1, 0.0)
    logits_ref = h_ref @ w2.T + b2
    ref = jax.nn.log_softmax(logits_ref, axis=1)

    assert out.shape == (B, 10)
    assert jnp.allclose(out, ref, atol=5e-2, rtol=5e-2), float(
        jnp.max(jnp.abs(out - ref)))

    print("KERNEL_OK")
</pallas_src>

<mosaic_0001>
module attributes {stable_mosaic.version = 11 : i64} {
  func.func @netquant_kernel(%arg0: i32, %arg1: memref<16x784xf32, #tpu.memory_space<vmem>>, %arg2: memref<784x128xbf16, #tpu.memory_space<vmem>>, %arg3: memref<1x128xf32, #tpu.memory_space<vmem>>, %arg4: memref<128x128xbf16, #tpu.memory_space<vmem>>, %arg5: memref<1x128xf32, #tpu.memory_space<vmem>>, %arg6: memref<16x128xbf16, #tpu.memory_space<vmem>>) attributes {dimension_semantics = [#tpu.dimension_semantics<parallel>], iteration_bounds = array<i64: 4>, scalar_prefetch = 0 : i64, scratch_operands = 0 : i64, tpu.core_type = #tpu.core_type<tc>, window_params = [{transform_indices = @transform_0, window_bounds = array<i64: 16, 784>}, {pipeline_mode = #tpu.pipeline_mode<synchronous>, transform_indices = @transform_1, window_bounds = array<i64: 784, 128>}, {pipeline_mode = #tpu.pipeline_mode<synchronous>, transform_indices = @transform_2, window_bounds = array<i64: 1, 128>}, {pipeline_mode = #tpu.pipeline_mode<synchronous>, transform_indices = @transform_3, window_bounds = array<i64: 128, 128>}, {pipeline_mode = #tpu.pipeline_mode<synchronous>, transform_indices = @transform_4, window_bounds = array<i64: 1, 128>}, {transform_indices = @transform_5, window_bounds = array<i64: 16, 128>}]} {
    %c0 = arith.constant 0 : index
    %c0_0 = arith.constant 0 : index
    %0 = vector.load %arg1[%c0, %c0_0] : memref<16x784xf32, #tpu.memory_space<vmem>>, vector<16x784xf32>
    %1 = arith.truncf %0 : vector<16x784xf32> to vector<16x784xbf16>
    %c0_1 = arith.constant 0 : index
    %c0_2 = arith.constant 0 : index
    %2 = vector.load %arg2[%c0_1, %c0_2] : memref<784x128xbf16, #tpu.memory_space<vmem>>, vector<784x128xbf16>
    %cst = arith.constant dense<0.000000e+00> : vector<16x128xf32>
    %3 = tpu.matmul %1, %2, %cst {dimension_numbers = #tpu.dot_dimension_numbers<[1], [0], [0], [1], [0, 0, 1, 1], [], []>} : vector<16x784xbf16>, vector<784x128xbf16>, vector<16x128xf32> -> vector<16x128xf32>
    %c0_3 = arith.constant 0 : index
    %c0_4 = arith.constant 0 : index
    %4 = vector.load %arg3[%c0_3, %c0_4] : memref<1x128xf32, #tpu.memory_space<vmem>>, vector<1x128xf32>
    %5 = vector.broadcast %4 : vector<1x128xf32> to vector<16x128xf32>
    %6 = arith.addf %3, %5 : vector<16x128xf32>
    %cst_5 = arith.constant 0.000000e+00 : f32
    %7 = vector.broadcast %cst_5 : f32 to vector<16x128xf32>
    %8 = arith.maximumf %6, %7 : vector<16x128xf32>
    %9 = arith.truncf %8 : vector<16x128xf32> to vector<16x128xbf16>
    %c0_6 = arith.constant 0 : index
    %c0_7 = arith.constant 0 : index
    %10 = vector.load %arg4[%c0_6, %c0_7] : memref<128x128xbf16, #tpu.memory_space<vmem>>, vector<128x128xbf16>
    %cst_8 = arith.constant dense<0.000000e+00> : vector<16x128xf32>
    %11 = tpu.matmul %9, %10, %cst_8 {dimension_numbers = #tpu.dot_dimension_numbers<[1], [0], [0], [1], [0, 0, 1, 1], [], []>} : vector<16x128xbf16>, vector<128x128xbf16>, vector<16x128xf32> -> vector<16x128xf32>
    %c0_9 = arith.constant 0 : index
    %c0_10 = arith.constant 0 : index
    %12 = vector.load %arg5[%c0_9, %c0_10] : memref<1x128xf32, #tpu.memory_space<vmem>>, vector<1x128xf32>
    %13 = vector.broadcast %12 : vector<1x128xf32> to vector<16x128xf32>
    %14 = arith.addf %11, %13 : vector<16x128xf32>
    %cst_11 = arith.constant dense<0xFF800000> : vector<16xf32>
    %15 = vector.multi_reduction <maximumf>, %14, %cst_11 [1] : vector<16x128xf32> to vector<16xf32>
    %16 = vector.shape_cast %15 : vector<16xf32> to vector<16x1xf32>
    %17 = vector.broadcast %16 : vector<16x1xf32> to vector<16x128xf32>
    %18 = arith.subf %14, %17 : vector<16x128xf32>
    %19 = math.exp %18 : vector<16x128xf32>
    %cst_12 = arith.constant dense<0.000000e+00> : vector<16xf32>
    %20 = vector.multi_reduction <add>, %19, %cst_12 [1] : vector<16x128xf32> to vector<16xf32>
    %21 = vector.shape_cast %20 : vector<16xf32> to vector<16x1xf32>
    %22 = math.log %21 : vector<16x1xf32>
    %23 = vector.broadcast %22 : vector<16x1xf32> to vector<16x128xf32>
    %24 = arith.subf %18, %23 : vector<16x128xf32>
    %25 = arith.truncf %24 : vector<16x128xf32> to vector<16x128xbf16>
    %c0_13 = arith.constant 0 : index
    %c0_14 = arith.constant 0 : index
    %26 = vector.load %arg6[%c0_13, %c0_14] : memref<16x128xbf16, #tpu.memory_space<vmem>>, vector<16x128xbf16>
    tpu.vector_store %arg6[%c0_13, %c0_14], %25 {strides = array<i32>} : memref<16x128xbf16, #tpu.memory_space<vmem>>, vector<16x128xbf16>,
    return
  }
  func.func @transform_0(%arg0: i32) -> (i32, i32) {
    %c0_i32 = arith.constant 0 : i32
    %c0_i32_0 = arith.constant 0 : i32
    return %arg0, %c0_i32 : i32, i32
  }
  func.func @transform_1(%arg0: i32) -> (i32, i32) {
    %c0_i32 = arith.constant 0 : i32
    %c0_i32_0 = arith.constant 0 : i32
    %c0_i32_1 = arith.constant 0 : i32
    return %c0_i32, %c0_i32_0 : i32, i32
  }
  func.func @transform_2(%arg0: i32) -> (i32, i32) {
    %c0_i32 = arith.constant 0 : i32
    %c0_i32_0 = arith.constant 0 : i32
    %c0_i32_1 = arith.constant 0 : i32
    return %c0_i32, %c0_i32_0 : i32, i32
  }
  func.func @transform_3(%arg0: i32) -> (i32, i32) {
    %c0_i32 = arith.constant 0 : i32
    %c0_i32_0 = arith.constant 0 : i32
    %c0_i32_1 = arith.constant 0 : i32
    return %c0_i32, %c0_i32_0 : i32, i32
  }
  func.func @transform_4(%arg0: i32) -> (i32, i32) {
    %c0_i32 = arith.constant 0 : i32
    %c0_i32_0 = arith.constant 0 : i32
    %c0_i32_1 = arith.constant 0 : i32
    return %c0_i32, %c0_i32_0 : i32, i32
  }
  func.func @transform_5(%arg0: i32) -> (i32, i32) {
    %c0_i32 = arith.constant 0 : i32
    %c0_i32_0 = arith.constant 0 : i32
    return %arg0, %c0_i32 : i32, i32
  }
}

</mosaic_0001>

<llo_original>
// kernel: tpu_custom_call.1
$region0: #{tpu_custom_call.1}
  #allocation0 [shape = 'u32[]', space=smem, size = 0x4, offset = 0x4, fixed_abs, tag = 'smem constant byte address 0x4 - core index']
  #allocation1 [shape = 'u32[72,128]{1,0:T(1,128)}', space=vmem, size = 0x9000, scoped, tag = 'internal scratch']
  %s0 = inlined_call_operand.hbm [shape: f32[64,784], index: 0, kind: input, shape index: {}]
  %s1 = inlined_call_operand.hbm [shape: bf16[784,128], index: 1, kind: input, shape index: {}]
  %s2 = inlined_call_operand.vmem [shape: f32[1,128], index: 2, kind: input, shape index: {}]
  %s3 = inlined_call_operand.hbm [shape: bf16[128,128], index: 3, kind: input, shape index: {}]
  %s4 = inlined_call_operand.vmem [shape: f32[1,128], index: 4, kind: input, shape index: {}]
  %s5 = inlined_call_operand.hbm [shape: bf16[64,128], index: 5, kind: output, shape index: {}]
  %s6 = sld [smem:[#allocation0]]
  $region65: #{tpu_custom_call.1} parent=0
    _
  %s8 = ssub.s32 1, %s6
  %s9 = scalar_select 0, %s8, %s6
  $region1: #{tpu_custom_call.1} parent=0
    #allocation2 [shape = 'u8[114688]{0}', space=vmem, size = 0x1c000, scoped, tag = 'input window, operand 0']
    #allocation3 [shape = 's32[2]{0}', space=sflag, size = 0x8, scoped, tag = 'scoped memory for tpu_custom_call.1']
    #allocation4 [shape = 's32[2]{0}', space=sflag, size = 0x8, scoped, tag = 'scoped memory for tpu_custom_call.1']
    #allocation5 [shape = 'u8[200704]{0}', space=vmem, size = 0x31000, scoped, tag = 'input window, operand 1, single buffered']
    #allocation6 [shape = 's32[1]{0}', space=sflag, size = 0x4, scoped, tag = 'scoped memory for tpu_custom_call.1']
    #allocation7 [shape = 'u8[32768]{0}', space=vmem, size = 0x8000, scoped, tag = 'input window, operand 3, single buffered']
    #allocation8 [shape = 'u8[8192]{0}', space=vmem, size = 0x2000, scoped, tag = 'output window, operand 0']
    %10 = vsyncpa [#allocation3], 0
    %s11 = scalar_lea.sflag [#allocation3], 1
    %12 = vsyncpa %s11, 0
    %13 = vsyncpa [#allocation6], 0
    %14 = vsyncpa [#allocation4], 0
    %s15 = scalar_lea.sflag [#allocation4], 1
    %16 = vsyncpa %s15, 0
    loop: start=0, step=1, limit=6
    $region2: #{tpu_custom_call.1} parent=1 // loop_pre_header
      _
    $region3: #{tpu_custom_call.1} parent=1 // loop_header
      %s18 = sphi 0, %s22
      %p19 = scmp.ge.s32.totalorder %s18, 6
      %s28 = sphi 0, %s30
      %s31 = sphi 0, %s28
      %s32 = sphi 0, %s31
      %s48 = sphi 0, %s32
      %s52 = sphi 0, %s52
      %s54 = sphi 0, %s52
      %s55 = sphi 0, %s54
      %s69 = sphi 0, %s55
      %s73 = sphi 0, %s73
      %s75 = sphi 0, %s73
      %s76 = sphi 0, %s75
      %s90 = sphi 0, %s76
      %s94 = sphi 0, %s94
      %s96 = sphi 0, %s94
      %s97 = sphi 0, %s96
      %s111 = sphi 0, %s97
      %s115 = sphi 0, %s115
      %s117 = sphi 0, %s115
      %s118 = sphi 0, %s117
      %s132 = sphi 0, %s118
      %s138 = sphi 0, %s140
      %s141 = sphi 0, %s138
      %s142 = sphi 0, %s141
      %s158 = sphi 0, %s142
    $region4: #{tpu_custom_call.1} parent=1 // loop_header_branch
      %21 = sbr.rel (%p19) target = $region8
    $region5: #{tpu_custom_call.1} parent=1 // loop_body
      %s23 = ssub.s32 %s18, 1
      %s24 = ssub.s32 %s18, 2
      %s25 = sadd.s32 %s18, 1
      %s26 = ssub.s32 %s18, %s25
      %p27 = scmp.eq.s32.totalorder %s26, 0
      %s29 = sadd.s32 %s28, 1
      %s30 = scalar_select %p27, %s28, %s29
      %p33 = pneg %p27
      %p34 = scmp.eq.s32.totalorder %s18, 3
      %p35 = por %p33, %p34
      %p36 = scmp.ne.s32.totalorder %s28, %s31
      %p37 = scmp.eq.s32.totalorder %s18, 0
      %p38 = por %p36, %p37
      %p39 = scmp.ne.s32.totalorder %s28, %s31
      %p40 = scmp.eq.s32.totalorder %s23, 3
      %p41 = por %p39, %p40
      %p42 = scmp.ne.s32.totalorder %s31, %s32
      %p43 = scmp.eq.s32.totalorder %s23, 0
      %p44 = por %p42, %p43
      %p45 = scmp.ne.s32.totalorder %s31, %s32
      %p46 = scmp.eq.s32.totalorder %s24, 3
      %p47 = por %p45, %p46
      %p49 = scmp.ne.s32.totalorder %s32, %s48
      %p50 = scmp.eq.s32.totalorder %s24, 0
      %p51 = por %p49, %p50
      %s53 = sadd.s32 %s52, 1
      %p56 = scmp.eq.s32.totalorder %s18, 3
      %p57 = scmp.ne.s32.totalorder %s52, %s54
      %p58 = scmp.eq.s32.totalorder %s18, 0
      %p59 = por %p57, %p58
      %p60 = scmp.ne.s32.totalorder %s52, %s54
      %p61 = scmp.eq.s32.totalorder %s23, 3
      %p62 = por %p60, %p61
      %p63 = scmp.ne.s32.totalorder %s54, %s55
      %p64 = scmp.eq.s32.totalorder %s23, 0
      %p65 = por %p63, %p64
      %p66 = scmp.ne.s32.totalorder %s54, %s55
      %p67 = scmp.eq.s32.totalorder %s24, 3
      %p68 = por %p66, %p67
      %p70 = scmp.ne.s32.totalorder %s55, %s69
      %p71 = scmp.eq.s32.totalorder %s24, 0
      %p72 = por %p70, %p71
      %s74 = sadd.s32 %s73, 1
      %p77 = scmp.eq.s32.totalorder %s18, 3
      %p78 = scmp.ne.s32.totalorder %s73, %s75
      %p79 = scmp.eq.s32.totalorder %s18, 0
      %p80 = por %p78, %p79
      %p81 = scmp.ne.s32.totalorder %s73, %s75
      %p82 = scmp.eq.s32.totalorder %s23, 3
      %p83 = por %p81, %p82
      %p84 = scmp.ne.s32.totalorder %s75, %s76
      %p85 = scmp.eq.s32.totalorder %s23, 0
      %p86 = por %p84, %p85
      %p87 = scmp.ne.s32.totalorder %s75, %s76
      %p88 = scmp.eq.s32.totalorder %s24, 3
      %p89 = por %p87, %p88
      %p91 = scmp.ne.s32.totalorder %s76, %s90
      %p92 = scmp.eq.s32.totalorder %s24, 0
      %p93 = por %p91, %p92
      %s95 = sadd.s32 %s94, 1
      %p98 = scmp.eq.s32.totalorder %s18, 3
      %p99 = scmp.ne.s32.totalorder %s94, %s96
      %p100 = scmp.eq.s32.totalorder %s18, 0
      %p101 = por %p99, %p100
      %p102 = scmp.ne.s32.totalorder %s94, %s96
      %p103 = scmp.eq.s32.totalorder %s23, 3
      %p104 = por %p102, %p103
      %p105 = scmp.ne.s32.totalorder %s96, %s97
      %p106 = scmp.eq.s32.totalorder %s23, 0
      %p107 = por %p105, %p106
      %p108 = scmp.ne.s32.totalorder %s96, %s97
      %p109 = scmp.eq.s32.totalorder %s24, 3
      %p110 = por %p108, %p109
      %p112 = scmp.ne.s32.totalorder %s97, %s111
      %p113 = scmp.eq.s32.totalorder %s24, 0
      %p114 = por %p112, %p113
      %s116 = sadd.s32 %s115, 1
      %p119 = scmp.eq.s32.totalorder %s18, 3
      %p120 = scmp.ne.s32.totalorder %s115, %s117
      %p121 = scmp.eq.s32.totalorder %s18, 0
      %p122 = por %p120, %p121
      %p123 = scmp.ne.s32.totalorder %s115, %s117
      %p124 = scmp.eq.s32.totalorder %s23, 3
      %p125 = por %p123, %p124
      %p126 = scmp.ne.s32.totalorder %s117, %s118
      %p127 = scmp.eq.s32.totalorder %s23, 0
      %p128 = por %p126, %p127
      %p129 = scmp.ne.s32.totalorder %s117, %s118
      %p130 = scmp.eq.s32.totalorder %s24, 3
      %p131 = por %p129, %p130
      %p133 = scmp.ne.s32.totalorder %s118, %s132
      %p134 = scmp.eq.s32.totalorder %s24, 0
      %p135 = por %p133, %p134
      %s136 = ssub.s32 %s18, %s25
      %p137 = scmp.eq.s32.totalorder %s136, 0
      %s139 = sadd.s32 %s138, 1
      %s140 = scalar_select %p137, %s138, %s139
      %p143 = pneg %p137
      %p144 = scmp.eq.s32.totalorder %s18, 3
      %p145 = por %p143, %p144
      %p146 = scmp.ne.s32.totalorder %s138, %s141
      %p147 = scmp.eq.s32.totalorder %s18, 0
      %p148 = por %p146, %p147
      %p149 = scmp.ne.s32.totalorder %s138, %s141
      %p150 = scmp.eq.s32.totalorder %s23, 3
      %p151 = por %p149, %p150
      %p152 = scmp.ne.s32.totalorder %s141, %s142
      %p153 = scmp.eq.s32.totalorder %s23, 0
      %p154 = por %p152, %p153
      %p155 = scmp.ne.s32.totalorder %s141, %s142
      %p156 = scmp.eq.s32.totalorder %s24, 3
      %p157 = por %p155, %p156
      %p159 = scmp.ne.s32.totalorder %s142, %s158
      %p160 = scmp.eq.s32.totalorder %s24, 0
      %p161 = por %p159, %p160
      %p162 = scmp.le.s32.totalorder 1, %s18
      %p163 = scmp.lt.s32.totalorder %s18, 5
      %p164 = pnand %p162, %p163
      %p165 = pneg %p164
      // Predicated region
      $region9: #{tpu_custom_call.1} parent=5 // pred_check
        _
      $region10: #{tpu_custom_call.1} parent=5 // pred_check_branch
        %167 = sbr.rel (%p164) target = $region12
      $region11: #{tpu_custom_call.1} parent=5 // pred_region
        %s168 = ssub.s32 %s18, 1
        // Predicated region
        $region13: #{tpu_custom_call.1} parent=11 // pred_check
          %p169 = pneg %p65
        $region14: #{tpu_custom_call.1} parent=11 // pred_check_branch
          %171 = sbr.rel (%p169) target = $region16
        $region15: #{tpu_custom_call.1} parent=11 // pred_region
          %173 = vsyncadd [#allocation6], 0
          %s174 = sshll.u32 %s1, 4
          %s175 = int_to_ptr.hbm [resolvable:$true] %s174
          %s176 = sshll.u32 [#allocation5], 4
          %s177 = int_to_ptr.vmem [resolvable:$true] %s176
          %182 = dma.hbm_to_vmem [thread:$0]  %s175, 6272, %s177, [#allocation6], 64, 64, 4
        $region16: #{tpu_custom_call.1} parent=11 // pred_fallthru
          _
        // Predicated region
        $region17: #{tpu_custom_call.1} parent=11 // pred_check
          %p183 = pneg %p86
        $region18: #{tpu_custom_call.1} parent=11 // pred_check_branch
          %185 = sbr.rel (%p183) target = $region20
        $region19: #{tpu_custom_call.1} parent=11 // pred_region
          _
        $region20: #{tpu_custom_call.1} parent=11 // pred_fallthru
          _
        // Predicated region
        $region21: #{tpu_custom_call.1} parent=11 // pred_check
          %p186 = pneg %p107
        $region22: #{tpu_custom_call.1} parent=11 // pred_check_branch
          %188 = sbr.rel (%p186) target = $region24
        $region23: #{tpu_custom_call.1} parent=11 // pred_region
          %190 = vsyncadd [#allocation6], 0
          %s191 = sshll.u32 %s3, 4
          %s192 = int_to_ptr.hbm [resolvable:$true] %s191
          %s193 = sshll.u32 [#allocation7], 4
          %s194 = int_to_ptr.vmem [resolvable:$true] %s193
          %199 = dma.hbm_to_vmem [thread:$0]  %s192, 1024, %s194, [#allocation6], 64, 64, 4
        $region24: #{tpu_custom_call.1} parent=11 // pred_fallthru
          _
        // Predicated region
        $region25: #{tpu_custom_call.1} parent=11 // pred_check
          %p200 = pneg %p128
        $region26: #{tpu_custom_call.1} parent=11 // pred_check_branch
          %202 = sbr.rel (%p200) target = $region28
        $region27: #{tpu_custom_call.1} parent=11 // pred_region
          _
        $region28: #{tpu_custom_call.1} parent=11 // pred_fallthru
          _
      $region12: #{tpu_custom_call.1} parent=5 // pred_fallthru
        _
      %p203 = scmp.lt.s32.totalorder %s18, 4
      // Predicated region
      $region29: #{tpu_custom_call.1} parent=5 // pred_check
        %p204 = pneg %p203
      $region30: #{tpu_custom_call.1} parent=5 // pred_check_branch
        %206 = sbr.rel (%p204) target = $region32
      $region31: #{tpu_custom_call.1} parent=5 // pred_region
        // Predicated region
        $region33: #{tpu_custom_call.1} parent=31 // pred_check
          %p207 = pneg %p38
        $region34: #{tpu_custom_call.1} parent=31 // pred_check_branch
          %209 = sbr.rel (%p207) target = $region36
        $region35: #{tpu_custom_call.1} parent=31 // pred_region
          %s210 = sand.u32 %s28, 1
          %s211 = scalar_lea.sflag [#allocation3], %s210
          %s212 = sand.u32 %s28, 1
          %s213 = smul.addr %s212, 112
          %s214 = scalar_lea.vmem [#allocation2], %s213
          %s215 = smul.u32 2, %s18
          %217 = vsyncadd %s211, 0
          %s218 = smul.addr %s215, 7
          %s219 = smul.addr %s218, 8
          %s220 = scalar_lea.hbm %s0, %s219
          %s221 = sshll.u32 %s220, 4
          %s222 = int_to_ptr.hbm [resolvable:$true] %s221
          %s223 = sshll.u32 %s214, 4
          %s224 = int_to_ptr.vmem [resolvable:$true] %s223
          %229 = dma.hbm_to_vmem [thread:$0]  %s222, 1792, %s224, %s211, 896, 896, 56
        $region36: #{tpu_custom_call.1} parent=31 // pred_fallthru
          _
      $region32: #{tpu_custom_call.1} parent=5 // pred_fallthru
        _
      %p230 = scmp.le.s32.totalorder 1, %s18
      %p231 = scmp.lt.s32.totalorder %s18, 5
      %p232 = pnand %p230, %p231
      %p233 = pneg %p232
      // Predicated region
      $region37: #{tpu_custom_call.1} parent=5 // pred_check
        _
      $region38: #{tpu_custom_call.1} parent=5 // pred_check_branch
        %235 = sbr.rel (%p232) target = $region40
      $region39: #{tpu_custom_call.1} parent=5 // pred_region
        %s236 = ssub.s32 %s18, 1
        %s237 = sand.u32 %s31, 1
        %s238 = scalar_lea.sflag [#allocation3], %s237
        %s239 = sand.u32 %s31, 1
        %s240 = smul.addr %s239, 112
        %s241 = scalar_lea.vmem [#allocation2], %s240
        // Predicated region
        $region41: #{tpu_custom_call.1} parent=39 // pred_check
          %p242 = pneg %p44
        $region42: #{tpu_custom_call.1} parent=39 // pred_check_branch
          %244 = sbr.rel (%p242) target = $region44
        $region43: #{tpu_custom_call.1} parent=39 // pred_region
          %246 = dma.done %s238, 1792
        $region44: #{tpu_custom_call.1} parent=39 // pred_fallthru
          _
        // Predicated region
        $region45: #{tpu_custom_call.1} parent=39 // pred_check
          %p247 = pneg %p65
        $region46: #{tpu_custom_call.1} parent=39 // pred_check_branch
          %249 = sbr.rel (%p247) target = $region48
        $region47: #{tpu_custom_call.1} parent=39 // pred_region
          %251 = dma.done [#allocation6], 6272
        $region48: #{tpu_custom_call.1} parent=39 // pred_fallthru
          _
        // Predicated region
        $region49: #{tpu_custom_call.1} parent=39 // pred_check
          %p252 = pneg %p107
        $region50: #{tpu_custom_call.1} parent=39 // pred_check_branch
          %254 = sbr.rel (%p252) target = $region52
        $region51: #{tpu_custom_call.1} parent=39 // pred_region
          %256 = dma.done [#allocation6], 1024
        $region52: #{tpu_custom_call.1} parent=39 // pred_fallthru
          _
        %s257 = sand.u32 %s31, 1
        %s258 = scalar_lea.sflag [#allocation3], %s257
        %s259 = sand.u32 %s31, 1
        %s260 = smul.addr %s259, 112
        %s261 = scalar_lea.vmem [#allocation2], %s260
        %p262 = pneg %p44
        %p263 = pneg %p41
        %p264 = pneg %p65
        %p265 = pneg %p62
        %p266 = pneg %p86
        %p267 = pneg %p83
        %p268 = pneg %p107
        %p269 = pneg %p104
        %p270 = pneg %p128
        %p271 = pneg %p125
        %p272 = pneg %p154
        %p273 = pneg %p151
        %s274 = sand.u32 %s141, 1
        %s275 = scalar_lea.sflag [#allocation4], %s274
        %s276 = sand.u32 %s141, 1
        %s277 = smul.addr %s276, 8
        %s278 = scalar_lea.vmem [#allocation8], %s277
        %s279 = smul.u32 2, %s23
        %s280 = smul.u32 2, %s23
        %v282 = vld [vmem:[%s241] sm:$0xff]
        %v283 = vld [vmem:[%s241 + $0x8] sm:$0xff]
        %v284 = vld [vmem:[%s241 + $0x10] sm:$0xff]
        %v285 = vld [vmem:[%s241 + $0x18] sm:$0xff]
        %v286 = vld [vmem:[%s241 + $0x20] sm:$0xff]
        %v287 = vld [vmem:[%s241 + $0x28] sm:$0xff]
        %v288 = vld [vmem:[%s241 + $0x30] sm:$0xff]
        %v289 = vld [vmem:[%s241 + $0x38] sm:$0xff]
        %v290 = vld [vmem:[%s241 + $0x40] sm:$0xff]
        %v291 = vld [vmem:[%s241 + $0x48] sm:$0xff]
        %v292 = vld [vmem:[%s241 + $0x50] sm:$0xff]
        %v293 = vld [vmem:[%s241 + $0x58] sm:$0xff]
        %v294 = vld [vmem:[%s241 + $0x60] sm:$0xff]
        %v295 = vld [vmem:[%s241 + $0x68] sm:$0xff]
        %v296 = vpack.c.bf16 %v289, %v282
        %v297 = vpack.c.bf16 %v290, %v283
        %v298 = vpack.c.bf16 %v291, %v284
        %v299 = vpack.c.bf16 %v292, %v285
        %v300 = vpack.c.bf16 %v293, %v286
        %v301 = vpack.c.bf16 %v294, %v287
        %v302 = vpack.c.bf16 %v295, %v288
        %v303 = vld [vmem:[#allocation5] sm:$0xf]
        %v304 = vld [vmem:[#allocation5 + $0x4] sm:$0xf]
        %v305 = vld [vmem:[#allocation5 + $0x8] sm:$0xf]
        %v306 = vld [vmem:[#allocation5 + $0xc] sm:$0xf]
        %v307 = vld [vmem:[#allocation5 + $0x10] sm:$0xf]
        %v308 = vld [vmem:[#allocation5 + $0x14] sm:$0xf]
        %v309 = vld [vmem:[#allocation5 + $0x18] sm:$0xf]
        %v310 = vld [vmem:[#allocation5 + $0x1c] sm:$0xf]
        %v311 = vld [vmem:[#allocation5 + $0x20] sm:$0xf]
        %v312 = vld [vmem:[#allocation5 + $0x24] sm:$0xf]
        %v313 = vld [vmem:[#allocation5 + $0x28] sm:$0xf]
        %v314 = vld [vmem:[#allocation5 + $0x2c] sm:$0xf]
        %v315 = vld [vmem:[#allocation5 + $0x30] sm:$0xf]
        %v316 = vld [vmem:[#allocation5 + $0x34] sm:$0xf]
        %v317 = vld [vmem:[#allocation5 + $0x38] sm:$0xf]
        %v318 = vld [vmem:[#allocation5 + $0x3c] sm:$0xf]
        %v319 = vld [vmem:[#allocation5 + $0x40] sm:$0xf]
        %v320 = vld [vmem:[#allocation5 + $0x44] sm:$0xf]
        %v321 = vld [vmem:[#allocation5 + $0x48] sm:$0xf]
        %v322 = vld [vmem:[#allocation5 + $0x4c] sm:$0xf]
        %v323 = vld [vmem:[#allocation5 + $0x50] sm:$0xf]
        %v324 = vld [vmem:[#allocation5 + $0x54] sm:$0xf]
        %v325 = vld [vmem:[#allocation5 + $0x58] sm:$0xf]
        %v326 = vld [vmem:[#allocation5 + $0x5c] sm:$0xf]
        %v327 = vld [vmem:[#allocation5 + $0x60] sm:$0xf]
        %v328 = vld [vmem:[#allocation5 + $0x64] sm:$0xf]
        %v329 = vld [vmem:[#allocation5 + $0x68] sm:$0xf]
        %v330 = vld [vmem:[#allocation5 + $0x6c] sm:$0xf]
        %v331 = vld [vmem:[#allocation5 + $0x70] sm:$0xf]
        %v332 = vld [vmem:[#allocation5 + $0x74] sm:$0xf]
        %v333 = vld [vmem:[#allocation5 + $0x78] sm:$0xf]
        %v334 = vld [vmem:[#allocation5 + $0x7c] sm:$0xf]
        %v335 = vld [vmem:[#allocation5 + $0x80] sm:$0xf]
        %v336 = vld [vmem:[#allocation5 + $0x84] sm:$0xf]
        %v337 = vld [vmem:[#allocation5 + $0x88] sm:$0xf]
        %v338 = vld [vmem:[#allocation5 + $0x8c] sm:$0xf]
        %v339 = vld [vmem:[#allocation5 + $0x90] sm:$0xf]
        %v340 = vld [vmem:[#allocation5 + $0x94] sm:$0xf]
        %v341 = vld [vmem:[#allocation5 + $0x98] sm:$0xf]
        %v342 = vld [vmem:[#allocation5 + $0x9c] sm:$0xf]
        %v343 = vld [vmem:[#allocation5 + $0xa0] sm:$0xf]
        %v344 = vld [vmem:[#allocation5 + $0xa4] sm:$0xf]
        %v345 = vld [vmem:[#allocation5 + $0xa8] sm:$0xf]
        %v346 = vld [vmem:[#allocation5 + $0xac] sm:$0xf]
        %v347 = vld [vmem:[#allocation5 + $0xb0] sm:$0xf]
        %v348 = vld [vmem:[#allocation5 + $0xb4] sm:$0xf]
        %v349 = vld [vmem:[#allocation5 + $0xb8] sm:$0xf]
        %v350 = vld [vmem:[#allocation5 + $0xbc] sm:$0xf]
        %v351 = vld [vmem:[#allocation5 + $0xc0] sm:$0xf]
        %v352 = vld [vmem:[#allocation5 + $0xc4] sm:$0xf]
        %v353 = vld [vmem:[#allocation5 + $0xc8] sm:$0xf]
        %v354 = vld [vmem:[#allocation5 + $0xcc] sm:$0xf]
        %v355 = vld [vmem:[#allocation5 + $0xd0] sm:$0xf]
        %v356 = vld [vmem:[#allocation5 + $0xd4] sm:$0xf]
        %v357 = vld [vmem:[#allocation5 + $0xd8] sm:$0xf]
        %v358 = vld [vmem:[#allocation5 + $0xdc] sm:$0xf]
        %v359 = vld [vmem:[#allocation5 + $0xe0] sm:$0xf]
        %v360 = vld [vmem:[#allocation5 + $0xe4] sm:$0xf]
        %v361 = vld [vmem:[#allocation5 + $0xe8] sm:$0xf]
        %v362 = vld [vmem:[#allocation5 + $0xec] sm:$0xf]
        %v363 = vld [vmem:[#allocation5 + $0xf0] sm:$0xf]
        %v364 = vld [vmem:[#allocation5 + $0xf4] sm:$0xf]
        %v365 = vld [vmem:[#allocation5 + $0xf8] sm:$0xf]
        %v366 = vld [vmem:[#allocation5 + $0xfc] sm:$0xf]
        %v367 = vld [vmem:[#allocation5 + $0x100] sm:$0xf]
        %v368 = vld [vmem:[#allocation5 + $0x104] sm:$0xf]
        %v369 = vld [vmem:[#allocation5 + $0x108] sm:$0xf]
        %v370 = vld [vmem:[#allocation5 + $0x10c] sm:$0xf]
        %v371 = vld [vmem:[#allocation5 + $0x110] sm:$0xf]
        %v372 = vld [vmem:[#allocation5 + $0x114] sm:$0xf]
        %v373 = vld [vmem:[#allocation5 + $0x118] sm:$0xf]
        %v374 = vld [vmem:[#allocation5 + $0x11c] sm:$0xf]
        %v375 = vld [vmem:[#allocation5 + $0x120] sm:$0xf]
        %v376 = vld [vmem:[#allocation5 + $0x124] sm:$0xf]
        %v377 = vld [vmem:[#allocation5 + $0x128] sm:$0xf]
        %v378 = vld [vmem:[#allocation5 + $0x12c] sm:$0xf]
        %v379 = vld [vmem:[#allocation5 + $0x130] sm:$0xf]
        %v380 = vld [vmem:[#allocation5 + $0x134] sm:$0xf]
        %v381 = vld [vmem:[#allocation5 + $0x138] sm:$0xf]
        %v382 = vld [vmem:[#allocation5 + $0x13c] sm:$0xf]
        %v383 = vld [vmem:[#allocation5 + $0x140] sm:$0xf]
        %v384 = vld [vmem:[#allocation5 + $0x144] sm:$0xf]
        %v385 = vld [vmem:[#allocation5 + $0x148] sm:$0xf]
        %v386 = vld [vmem:[#allocation5 + $0x14c] sm:$0xf]
        %v387 = vld [vmem:[#allocation5 + $0x150] sm:$0xf]
        %v388 = vld [vmem:[#allocation5 + $0x154] sm:$0xf]
        %v389 = vld [vmem:[#allocation5 + $0x158] sm:$0xf]
        %v390 = vld [vmem:[#allocation5 + $0x15c] sm:$0xf]
        %v391 = vld [vmem:[#allocation5 + $0x160] sm:$0xf]
        %v392 = vld [vmem:[#allocation5 + $0x164] sm:$0xf]
        %v393 = vld [vmem:[#allocation5 + $0x168] sm:$0xf]
        %v394 = vld [vmem:[#allocation5 + $0x16c] sm:$0xf]
        %v395 = vld [vmem:[#allocation5 + $0x170] sm:$0xf]
        %v396 = vld [vmem:[#allocation5 + $0x174] sm:$0xf]
        %v397 = vld [vmem:[#allocation5 + $0x178] sm:$0xf]
        %v398 = vld [vmem:[#allocation5 + $0x17c] sm:$0xf]
        %v399 = vld [vmem:[#allocation5 + $0x180] sm:$0xf]
        %v400 = vld [vmem:[#allocation5 + $0x184] sm:$0xf]
        %v401 = vld [vmem:[%s2] sm:$0x1]
        %v403 = vperm.slane %v401, 0
        %v503 = vunpack.c.l.b16 %v303
        %v504 = vunpack.c.l.b16 %v304
        %v505 = vunpack.c.l.b16 %v305
        %v506 = vunpack.c.l.b16 %v306
        %v507 = vunpack.c.l.b16 %v307
        %v508 = vunpack.c.l.b16 %v308
        %v509 = vunpack.c.l.b16 %v309
        %v510 = vunpack.c.l.b16 %v310
        %v511 = vunpack.c.l.b16 %v311
        %v512 = vunpack.c.l.b16 %v312
        %v513 = vunpack.c.l.b16 %v313
        %v514 = vunpack.c.l.b16 %v314
        %v515 = vunpack.c.l.b16 %v315
        %v516 = vunpack.c.l.b16 %v316
        %v517 = vunpack.c.l.b16 %v317
        %v518 = vunpack.c.l.b16 %v318
        %v519 = vunpack.c.l.b16 %v319
        %v520 = vunpack.c.l.b16 %v320
        %v521 = vunpack.c.l.b16 %v321
        %v522 = vunpack.c.l.b16 %v322
        %v523 = vunpack.c.l.b16 %v323
        %v524 = vunpack.c.l.b16 %v324
        %v525 = vunpack.c.l.b16 %v325
        %v526 = vunpack.c.l.b16 %v326
        %v527 = vunpack.c.l.b16 %v327
        %v528 = vunpack.c.l.b16 %v328
        %v529 = vunpack.c.l.b16 %v329
        %v530 = vunpack.c.l.b16 %v330
        %v531 = vunpack.c.l.b16 %v331
        %v532 = vunpack.c.l.b16 %v332
        %v533 = vunpack.c.l.b16 %v333
        %v534 = vunpack.c.l.b16 %v334
        %v535 = vunpack.c.l.b16 %v335
        %v536 = vunpack.c.l.b16 %v336
        %v537 = vunpack.c.l.b16 %v337
        %v538 = vunpack.c.l.b16 %v338
        %v539 = vunpack.c.l.b16 %v339
        %v540 = vunpack.c.l.b16 %v340
        %v541 = vunpack.c.l.b16 %v341
        %v542 = vunpack.c.l.b16 %v342
        %v543 = vunpack.c.l.b16 %v343
        %v544 = vunpack.c.l.b16 %v344
        %v545 = vunpack.c.l.b16 %v345
        %v546 = vunpack.c.l.b16 %v346
        %v547 = vunpack.c.l.b16 %v347
        %v548 = vunpack.c.l.b16 %v348
        %v549 = vunpack.c.l.b16 %v349
        %v550 = vunpack.c.l.b16 %v350
        %v551 = vunpack.c.l.b16 %v351
        %v552 = vunpack.c.l.b16 %v352
        %v553 = vunpack.c.l.b16 %v353
        %v554 = vunpack.c.l.b16 %v354
        %v555 = vunpack.c.l.b16 %v355
        %v556 = vunpack.c.l.b16 %v356
        %v557 = vunpack.c.l.b16 %v357
        %v558 = vunpack.c.l.b16 %v358
        %v559 = vunpack.c.l.b16 %v359
        %v560 = vunpack.c.l.b16 %v360
        %v561 = vunpack.c.l.b16 %v361
        %v562 = vunpack.c.l.b16 %v362
        %v563 = vunpack.c.l.b16 %v363
        %v564 = vunpack.c.l.b16 %v364
        %v565 = vunpack.c.l.b16 %v365
        %v566 = vunpack.c.l.b16 %v366
        %v567 = vunpack.c.l.b16 %v367
        %v568 = vunpack.c.l.b16 %v368
        %v569 = vunpack.c.l.b16 %v369
        %v570 = vunpack.c.l.b16 %v370
        %v571 = vunpack.c.l.b16 %v371
        %v572 = vunpack.c.l.b16 %v372
        %v573 = vunpack.c.l.b16 %v373
        %v574 = vunpack.c.l.b16 %v374
        %v575 = vunpack.c.l.b16 %v375
        %v576 = vunpack.c.l.b16 %v376
        %v577 = vunpack.c.l.b16 %v377
        %v578 = vunpack.c.l.b16 %v378
        %v579 = vunpack.c.l.b16 %v379
        %v580 = vunpack.c.l.b16 %v380
        %v581 = vunpack.c.l.b16 %v381
        %v582 = vunpack.c.l.b16 %v382
        %v583 = vunpack.c.l.b16 %v383
        %v584 = vunpack.c.l.b16 %v384
        %v585 = vunpack.c.l.b16 %v385
        %v586 = vunpack.c.l.b16 %v386
        %v587 = vunpack.c.l.b16 %v387
        %v588 = vunpack.c.l.b16 %v388
        %v589 = vunpack.c.l.b16 %v389
        %v590 = vunpack.c.l.b16 %v390
        %v591 = vunpack.c.l.b16 %v391
        %v592 = vunpack.c.l.b16 %v392
        %v593 = vunpack.c.l.b16 %v393
        %v594 = vunpack.c.l.b16 %v394
        %v595 = vunpack.c.l.b16 %v395
        %v596 = vunpack.c.l.b16 %v396
        %v597 = vunpack.c.l.b16 %v397
        %v598 = vunpack.c.l.b16 %v398
        %v599 = vunpack.c.l.b16 %v399
        %v600 = vunpack.c.l.b16 %v400
        %v601 = vpack.c.b16 %v504, %v503
        %v602 = vpack.c.b16 %v506, %v505
        %v603 = vpack.c.b16 %v508, %v507
        %v604 = vpack.c.b16 %v510, %v509
        %v605 = vpack.c.b16 %v512, %v511
        %v606 = vpack.c.b16 %v514, %v513
        %v607 = vpack.c.b16 %v516, %v515
        %v608 = vpack.c.b16 %v518, %v517
        %v609 = vpack.c.b16 %v520, %v519
        %v610 = vpack.c.b16 %v522, %v521
        %v611 = vpack.c.b16 %v524, %v523
        %v612 = vpack.c.b16 %v526, %v525
        %v613 = vpack.c.b16 %v528, %v527
        %v614 = vpack.c.b16 %v530, %v529
        %v615 = vpack.c.b16 %v532, %v531
        %v616 = vpack.c.b16 %v534, %v533
        %v617 = vpack.c.b16 %v536, %v535
        %v618 = vpack.c.b16 %v538, %v537
        %v619 = vpack.c.b16 %v540, %v539
        %v620 = vpack.c.b16 %v542, %v541
        %v621 = vpack.c.b16 %v544, %v543
        %v622 = vpack.c.b16 %v546, %v545
        %v623 = vpack.c.b16 %v548, %v547
        %v624 = vpack.c.b16 %v550, %v549
        %v625 = vpack.c.b16 %v552, %v551
        %v626 = vpack.c.b16 %v554, %v553
        %v627 = vpack.c.b16 %v556, %v555
        %v628 = vpack.c.b16 %v558, %v557
        %v629 = vpack.c.b16 %v560, %v559
        %v630 = vpack.c.b16 %v562, %v561
        %v631 = vpack.c.b16 %v564, %v563
        %v632 = vpack.c.b16 %v566, %v565
        %v633 = vpack.c.b16 %v568, %v567
        %v634 = vpack.c.b16 %v570, %v569
        %v635 = vpack.c.b16 %v572, %v571
        %v636 = vpack.c.b16 %v574, %v573
        %v637 = vpack.c.b16 %v576, %v575
        %v638 = vpack.c.b16 %v578, %v577
        %v639 = vpack.c.b16 %v580, %v579
        %v640 = vpack.c.b16 %v582, %v581
        %v641 = vpack.c.b16 %v584, %v583
        %v642 = vpack.c.b16 %v586, %v585
        %v643 = vpack.c.b16 %v588, %v587
        %v644 = vpack.c.b16 %v590, %v589
        %v645 = vpack.c.b16 %v592, %v591
        %v646 = vpack.c.b16 %v594, %v593
        %v647 = vpack.c.b16 %v596, %v595
        %v648 = vpack.c.b16 %v598, %v597
        %v649 = vpack.c.b16 %v600, %v599
        %vm699 = vcmask 130048
        %v701 = vsel %vm699, %v302, 0
        %703 = vmatpush.bf16.msra.mxu0 %v608
        %704 = vmatpush.bf16.msra.mxu0 %v607
        %705 = vmatpush.bf16.msra.mxu0 %v606
        %706 = vmatpush.bf16.msra.mxu0 %v605
        %707 = vmatpush.bf16.msra.mxu0 %v604
        %708 = vmatpush.bf16.msra.mxu0 %v603
        %709 = vmatpush.bf16.msra.mxu0 %v602
        %710 = vmatpush.bf16.msra.mxu0 %v601
        %711 = vmatmul.bf16.gmra.mxu0 %v296
        %v712 = vpop.f32.mrf.mxu0
        %v713 = vadd.f32 %v403, %v712
        %v714 = vpop.f32.mrf.mxu0
        %v715 = vadd.f32 %v403, %v714
        %716 = vdwg.mxu0
        %717 = vmatpush.bf16.msra.mxu0 %v616
        %718 = vmatpush.bf16.msra.mxu0 %v615
        %719 = vmatpush.bf16.msra.mxu0 %v614
        %720 = vmatpush.bf16.msra.mxu0 %v613
        %721 = vmatpush.bf16.msra.mxu0 %v612
        %722 = vmatpush.bf16.msra.mxu0 %v611
        %723 = vmatpush.bf16.msra.mxu0 %v610
        %724 = vmatpush.bf16.msra.mxu0 %v609
        %725 = vmatmul.bf16.gmra.mxu0 %v297
        %v726 = vpop.f32.mrf.mxu0
        %v727 = vadd.f32 %v713, %v726
        %v728 = vpop.f32.mrf.mxu0
        %v729 = vadd.f32 %v715, %v728
        %730 = vdwg.mxu0
        %731 = vmatpush.bf16.msra.mxu0 %v624
        %732 = vmatpush.bf16.msra.mxu0 %v623
        %733 = vmatpush.bf16.msra.mxu0 %v622
        %734 = vmatpush.bf16.msra.mxu0 %v621
        %735 = vmatpush.bf16.msra.mxu0 %v620
        %736 = vmatpush.bf16.msra.mxu0 %v619
        %737 = vmatpush.bf16.msra.mxu0 %v618
        %738 = vmatpush.bf16.msra.mxu0 %v617
        %739 = vmatmul.bf16.gmra.mxu0 %v298
        %v740 = vpop.f32.mrf.mxu0
        %v741 = vadd.f32 %v727, %v740
        %v742 = vpop.f32.mrf.mxu0
        %v743 = vadd.f32 %v729, %v742
        %744 = vdwg.mxu0
        %745 = vmatpush.bf16.msra.mxu0 %v632
        %746 = vmatpush.bf16.msra.mxu0 %v631
        %747 = vmatpush.bf16.msra.mxu0 %v630
        %748 = vmatpush.bf16.msra.mxu0 %v629
        %749 = vmatpush.bf16.msra.mxu0 %v628
        %750 = vmatpush.bf16.msra.mxu0 %v627
        %751 = vmatpush.bf16.msra.mxu0 %v626
        %752 = vmatpush.bf16.msra.mxu0 %v625
        %753 = vmatmul.bf16.gmra.mxu0 %v299
        %v754 = vpop.f32.mrf.mxu0
        %v755 = vadd.f32 %v741, %v754
        %v756 = vpop.f32.mrf.mxu0
        %v757 = vadd.f32 %v743, %v756
        %758 = vdwg.mxu0
        %759 = vmatpush.bf16.msra.mxu0 %v640
        %760 = vmatpush.bf16.msra.mxu0 %v639
        %761 = vmatpush.bf16.msra.mxu0 %v638
        %762 = vmatpush.bf16.msra.mxu0 %v637
        %763 = vmatpush.bf16.msra.mxu0 %v636
        %764 = vmatpush.bf16.msra.mxu0 %v635
        %765 = vmatpush.bf16.msra.mxu0 %v634
        %766 = vmatpush.bf16.msra.mxu0 %v633
        %767 = vmatmul.bf16.gmra.mxu0 %v300
        %v768 = vpop.f32.mrf.mxu0
        %v769 = vadd.f32 %v755, %v768
        %v770 = vpop.f32.mrf.mxu0
        %v771 = vadd.f32 %v757, %v770
        %772 = vdwg.mxu0
        %773 = vmatpush.bf16.msra.mxu0 %v648
        %774 = vmatpush.bf16.msra.mxu0 %v647
        %775 = vmatpush.bf16.msra.mxu0 %v646
        %776 = vmatpush.bf16.msra.mxu0 %v645
        %777 = vmatpush.bf16.msra.mxu0 %v644
        %778 = vmatpush.bf16.msra.mxu0 %v643
        %779 = vmatpush.bf16.msra.mxu0 %v642
        %780 = vmatpush.bf16.msra.mxu0 %v641
        %781 = vmatmul.bf16.gmra.mxu0 %v301
        %v782 = vpop.f32.mrf.mxu0
        %v783 = vadd.f32 %v769, %v782
        %v784 = vpop.f32.mrf.mxu0
        %v785 = vadd.f32 %v771, %v784
        %786 = vdwg.mxu0
        %787 = vmatpush.bf16.msra.mxu0 0
        %788 = vmatpush.bf16.msra.mxu0 0
        %789 = vmatpush.bf16.msra.mxu0 0
        %790 = vmatpush.bf16.msra.mxu0 0
        %791 = vmatpush.bf16.msra.mxu0 0
        %792 = vmatpush.bf16.msra.mxu0 0
        %793 = vmatpush.bf16.msra.mxu0 0
        %794 = vmatpush.bf16.msra.mxu0 %v649
        %795 = vmatmul.bf16.gmra.mxu0 %v701
        %v796 = vpop.f32.mrf.mxu0
        %v797 = vadd.f32 %v783, %v796
        %v798 = vpop.f32.mrf.mxu0
        %v799 = vadd.f32 %v785, %v798
        %800 = vdwg.mxu0
        %v801 = vmax.f32 %v797, 0.0
        %v802 = vmax.f32 %v799, 0.0
        %v803 = vpack.c.bf16 %v802, %v801
        %v804 = vld [vmem:[#allocation7] sm:$0xf]
        %v805 = vld [vmem:[#allocation7 + $0x4] sm:$0xf]
        %v806 = vld [vmem:[#allocation7 + $0x8] sm:$0xf]
        %v807 = vld [vmem:[#allocation7 + $0xc] sm:$0xf]
        %v808 = vld [vmem:[#allocation7 + $0x10] sm:$0xf]
        %v809 = vld [vmem:[#allocation7 + $0x14] sm:$0xf]
        %v810 = vld [vmem:[#allocation7 + $0x18] sm:$0xf]
        %v811 = vld [vmem:[#allocation7 + $0x1c] sm:$0xf]
        %v812 = vld [vmem:[#allocation7 + $0x20] sm:$0xf]
        %v813 = vld [vmem:[#allocation7 + $0x24] sm:$0xf]
        %v814 = vld [vmem:[#allocation7 + $0x28] sm:$0xf]
        %v815 = vld [vmem:[#allocation7 + $0x2c] sm:$0xf]
        %v816 = vld [vmem:[#allocation7 + $0x30] sm:$0xf]
        %v817 = vld [vmem:[#allocation7 + $0x34] sm:$0xf]
        %v818 = vld [vmem:[#allocation7 + $0x38] sm:$0xf]
        %v819 = vld [vmem:[#allocation7 + $0x3c] sm:$0xf]
        %v820 = vld [vmem:[%s4] sm:$0x1]
        %v822 = vperm.slane %v820, 0
        %v840 = vunpack.c.l.b16 %v804
        %v841 = vunpack.c.l.b16 %v805
        %v842 = vunpack.c.l.b16 %v806
        %v843 = vunpack.c.l.b16 %v807
        %v844 = vunpack.c.l.b16 %v808
        %v845 = vunpack.c.l.b16 %v809
        %v846 = vunpack.c.l.b16 %v810
        %v847 = vunpack.c.l.b16 %v811
        %v848 = vunpack.c.l.b16 %v812
        %v849 = vunpack.c.l.b16 %v813
        %v850 = vunpack.c.l.b16 %v814
        %v851 = vunpack.c.l.b16 %v815
        %v852 = vunpack.c.l.b16 %v816
        %v853 = vunpack.c.l.b16 %v817
        %v854 = vunpack.c.l.b16 %v818
        %v855 = vunpack.c.l.b16 %v819
        %v856 = vpack.c.b16 %v841, %v840
        %v857 = vpack.c.b16 %v843, %v842
        %v858 = vpack.c.b16 %v845, %v844
        %v859 = vpack.c.b16 %v847, %v846
        %v860 = vpack.c.b16 %v849, %v848
        %v861 = vpack.c.b16 %v851, %v850
        %v862 = vpack.c.b16 %v853, %v852
        %v863 = vpack.c.b16 %v855, %v854
        %872 = vmatpush.bf16.msra.mxu0 %v863
        %873 = vmatpush.bf16.msra.mxu0 %v862
        %874 = vmatpush.bf16.msra.mxu0 %v861
        %875 = vmatpush.bf16.msra.mxu0 %v860
        %876 = vmatpush.bf16.msra.mxu0 %v859
        %877 = vmatpush.bf16.msra.mxu0 %v858
        %878 = vmatpush.bf16.msra.mxu0 %v857
        %879 = vmatpush.bf16.msra.mxu0 %v856
        %880 = vmatmul.bf16.gmra.mxu0 %v803
        %v881 = vpop.f32.mrf.mxu0
        %v882 = vadd.f32 %v822, %v881
        %v883 = vpop.f32.mrf.mxu0
        %v884 = vadd.f32 %v822, %v883
        %885 = vdwg.mxu0
        %886 = vmax.xlane.f32.xlu0 %v882
        %v887 = vpop.xlane.xlu0 %886
        %888 = vmax.xlane.f32.xlu0 %v884
        %v889 = vpop.xlane.xlu0 %888
        %v890 = vsub.f32 %v882, %v887
        %v891 = vsub.f32 %v884, %v889
        %v892 = vmul.f32 %v890, 1.442695
        %v893 = vpow.pop %v892
        %v894 = vmul.f32 %v891, 1.442695
        %v895 = vpow.pop %v894
        %896 = vadd.xlane.f32.xlu0 %v893
        %v897 = vpop.xlane.xlu0 %896
        %898 = vadd.xlane.f32.xlu0 %v895
        %v899 = vpop.xlane.xlu0 %898
        %v900 = vlog2.pop %v897
        %v901 = vmul.f32 %v900, 0.6931472
        %v902 = vlog2.pop %v899
        %v903 = vmul.f32 %v902, 0.6931472
        %v904 = vsub.f32 %v890, %v901
        %v905 = vsub.f32 %v891, %v903
        %v906 = vpack.c.bf16 %v904, %v904
        %v907 = vpack.c.bf16 %v905, %v905
        %908 = vst [vmem:[%s278] sm:$0xf] %v906
        %909 = vst [vmem:[%s278 + $0x4] sm:$0xf] %v907
        %s910 = sand.u32 %s141, 1
        %s911 = scalar_lea.sflag [#allocation4], %s910
        %s912 = sand.u32 %s141, 1
        %s913 = smul.addr %s912, 8
        %s914 = scalar_lea.vmem [#allocation8], %s913
        // Predicated region
        $region53: #{tpu_custom_call.1} parent=39 // pred_check
          %p915 = pneg %p151
        $region54: #{tpu_custom_call.1} parent=39 // pred_check_branch
          %917 = sbr.rel (%p915) target = $region56
        $region55: #{tpu_custom_call.1} parent=39 // pred_region
          %s918 = smul.u32 2, %s23
          %920 = vsyncadd %s911, 0
          %s921 = smul.addr %s918, 4
          %s922 = scalar_lea.hbm %s5, %s921
          %s923 = sshll.u32 %s914, 4
          %s924 = int_to_ptr.vmem [resolvable:$true] %s923
          %s925 = sshll.u32 %s922, 4
          %s926 = int_to_ptr.hbm [resolvable:$true] %s925
          %931 = dma.vmem_to_hbm [thread:$0]  %s924, 128, %s926, %s911, 64, 64, 4
        $region56: #{tpu_custom_call.1} parent=39 // pred_fallthru
          _
      $region40: #{tpu_custom_call.1} parent=5 // pred_fallthru
        _
      %p932 = scmp.le.s32.totalorder 2, %s18
      // Predicated region
      $region57: #{tpu_custom_call.1} parent=5 // pred_check
        %p933 = pneg %p932
      $region58: #{tpu_custom_call.1} parent=5 // pred_check_branch
        %935 = sbr.rel (%p933) target = $region60
      $region59: #{tpu_custom_call.1} parent=5 // pred_region
        %s936 = ssub.s32 %s18, 2
        // Predicated region
        $region61: #{tpu_custom_call.1} parent=59 // pred_check
          %p937 = pneg %p157
        $region62: #{tpu_custom_call.1} parent=59 // pred_check_branch
          %939 = sbr.rel (%p937) target = $region64
        $region63: #{tpu_custom_call.1} parent=59 // pred_region
          %s940 = sand.u32 %s142, 1
          %s941 = scalar_lea.sflag [#allocation4], %s940
          %s942 = sand.u32 %s142, 1
          %s943 = smul.addr %s942, 8
          %s944 = scalar_lea.vmem [#allocation8], %s943
          %946 = dma.done %s941, 128
        $region64: #{tpu_custom_call.1} parent=59 // pred_fallthru
          _
      $region60: #{tpu_custom_call.1} parent=5 // pred_fallthru
        _
    $region6: #{tpu_custom_call.1} parent=1 // loop_footer
      %s22 = sadd.s32 1, %s18
    $region7: #{tpu_custom_call.1} parent=1 // loop_footer_branch
      %17 = sbr.rel target = $region3
    $region8: #{tpu_custom_call.1} parent=1 // loop_exit
      _
    %947 = vsyncpa [#allocation3], 1
    %s948 = scalar_lea.sflag [#allocation3], 1
    %949 = vsyncpa %s948, 1
    %950 = vsyncpa [#allocation6], 1
    %951 = vsyncpa [#allocation4], 1
    %s952 = scalar_lea.sflag [#allocation4], 1
    %953 = vsyncpa %s952, 1

</llo_original>
